<compile_context>
chip_gen: v6e
topology: v6e:2x2x1
jax: 0.10.0
libtpu: 0.0.40
codegen_flags: <defaults>
</compile_context>

<pallas_src>
import functools

import jax
import jax.numpy as jnp
from jax.experimental import pallas as pl
from jax.experimental.pallas import tpu as pltpu

IN_DIM = 784
HID_DIM = 64


def autoencoder_kernel(x_ref, w1_ref, b1_ref, w2_ref, b2_ref, o_ref):
    # Encoder: Linear(784 -> 64) + ReLU. bf16 operands, f32 accumulation on MXU.
    x_bf16 = x_ref[...].astype(jnp.bfloat16)
    h = jnp.dot(x_bf16, w1_ref[...], preferred_element_type=jnp.float32)
    h = jnp.maximum(h + b1_ref[...], 0.0)          # (TB,64) + (1,64), VPU
    # Decoder: Linear(64 -> 784) + Sigmoid.
    y = jnp.dot(h.astype(jnp.bfloat16), w2_ref[...],
                preferred_element_type=jnp.float32)
    y = y + b2_ref[...]                            # (TB,784) + (1,784), VPU
    # sigmoid(y) == 0.5*tanh(0.5*y) + 0.5: single EUP transcendental per vreg
    # (vs exp + reciprocal = 2x EUP pushes); mul/add go to the VPU for free.
    o_ref[...] = (0.5 * jnp.tanh(0.5 * y) + 0.5).astype(o_ref.dtype)


def _round_up(n, m):
    return ((n + m - 1) // m) * m


@functools.partial(jax.jit, static_argnames=("block_b",))
def autoencoder_forward(x, w1, b1, w2, b2, *, block_b=512):
    B = x.shape[0]
    # Batch tile: multiple of 8 (sublane), default 512 rows. Double-buffered
    # footprint at TB=512 is ~6.7 MiB (2x in + 2x out tiles + resident weights),
    # far under every generation's VMEM; small batches collapse to one tile.
    TB = min(block_b, _round_up(B, 8))
    grid = (pl.cdiv(B, TB),)

    # Cast weights to bf16 once per call (tiny tensors; a real model would keep
    # them stored in bf16). Biases stay f32 and are added post-accumulation.
    w1_bf16 = w1.astype(jnp.bfloat16)
    w2_bf16 = w2.astype(jnp.bfloat16)

    return pl.pallas_call(
        autoencoder_kernel,
        out_shape=jax.ShapeDtypeStruct((B, IN_DIM), x.dtype),
        grid=grid,
        in_specs=[
            # Activations: tiled along batch -> double-buffered DMA pipeline.
            # Partial tail block (B % TB != 0) is masked by Pallas: no padding
            # copy on input, no slice copy on output.
            pl.BlockSpec((TB, IN_DIM), lambda i: (i, 0)),
            # Weights / biases: constant block index -> loaded once, kept
            # resident in VMEM across all grid iterations.
            pl.BlockSpec((IN_DIM, HID_DIM), lambda i: (0, 0)),
            pl.BlockSpec((1, HID_DIM), lambda i: (0, 0)),
            pl.BlockSpec((HID_DIM, IN_DIM), lambda i: (0, 0)),
            pl.BlockSpec((1, IN_DIM), lambda i: (0, 0)),
        ],
        out_specs=pl.BlockSpec((TB, IN_DIM), lambda i: (i, 0)),
        compiler_params=pltpu.CompilerParams(
            # Independent batch tiles -> megacore sharding on v7x; no-op elsewhere.
            dimension_semantics=("parallel",),
            # Safe on v7x's 64 MiB physical VMEM; plenty for TB<=1024 on v5e/v6e.
            vmem_limit_bytes=32 << 20,
        ),
    )(x, w1_bf16, b1, w2_bf16, b2)


def init_params(key):
    # Mimic PyTorch nn.Linear default init: U(-1/sqrt(fan_in), 1/sqrt(fan_in)).
    k1, k2, k3, k4 = jax.random.split(key, 4)
    bound1 = 1.0 / jnp.sqrt(jnp.float32(IN_DIM))
    bound2 = 1.0 / jnp.sqrt(jnp.float32(HID_DIM))
    w1 = jax.random.uniform(k1, (IN_DIM, HID_DIM), jnp.float32, -bound1, bound1)
    b1 = jax.random.uniform(k2, (1, HID_DIM), jnp.float32, -bound1, bound1)
    w2 = jax.random.uniform(k3, (HID_DIM, IN_DIM), jnp.float32, -bound2, bound2)
    b2 = jax.random.uniform(k4, (1, IN_DIM), jnp.float32, -bound2, bound2)
    return w1, b1, w2, b2


def reference_forward(x, w1, b1, w2, b2):
    h = jnp.maximum(x @ w1 + b1, 0.0)
    return jax.nn.sigmoid(h @ w2 + b2)


if __name__ == "__main__":
    key = jax.random.PRNGKey(0)
    kx, kp = jax.random.split(key)
    w1, b1, w2, b2 = init_params(kp)

    # Tolerance covers bf16 matmul operands (f32 accumulate) vs the f32 reference.
    for B in (8, 13):  # aligned batch and ragged batch (exercises masked tail tile)
        x = jax.random.normal(jax.random.fold_in(kx, B), (B, IN_DIM), jnp.float32)
        out = jax.block_until_ready(autoencoder_forward(x, w1, b1, w2, b2))
        ref = reference_forward(x, w1, b1, w2, b2)
        assert out.shape == (B, IN_DIM)
        assert jnp.allclose(out, ref, atol=2e-2, rtol=2e-2), float(
            jnp.max(jnp.abs(out - ref))
        )

    print("KERNEL_OK")
</pallas_src>

<mosaic_0001>
module attributes {stable_mosaic.version = 11 : i64} {
  func.func @autoencoder_kernel(%arg0: i32, %arg1: memref<8x784xf32, #tpu.memory_space<vmem>>, %arg2: memref<784x64xbf16, #tpu.memory_space<vmem>>, %arg3: memref<1x64xf32, #tpu.memory_space<vmem>>, %arg4: memref<64x784xbf16, #tpu.memory_space<vmem>>, %arg5: memref<1x784xf32, #tpu.memory_space<vmem>>, %arg6: memref<8x784xf32, #tpu.memory_space<vmem>>) attributes {dimension_semantics = [#tpu.dimension_semantics<parallel>], iteration_bounds = array<i64: 1>, scalar_prefetch = 0 : i64, scratch_operands = 0 : i64, tpu.core_type = #tpu.core_type<tc>, window_params = [{transform_indices = @transform_0, window_bounds = array<i64: 8, 784>}, {pipeline_mode = #tpu.pipeline_mode<synchronous>, transform_indices = @transform_1, window_bounds = array<i64: 784, 64>}, {pipeline_mode = #tpu.pipeline_mode<synchronous>, transform_indices = @transform_2, window_bounds = array<i64: 1, 64>}, {pipeline_mode = #tpu.pipeline_mode<synchronous>, transform_indices = @transform_3, window_bounds = array<i64: 64, 784>}, {pipeline_mode = #tpu.pipeline_mode<synchronous>, transform_indices = @transform_4, window_bounds = array<i64: 1, 784>}, {transform_indices = @transform_5, window_bounds = array<i64: 8, 784>}]} {
    %c0 = arith.constant 0 : index
    %c0_0 = arith.constant 0 : index
    %0 = vector.load %arg1[%c0, %c0_0] : memref<8x784xf32, #tpu.memory_space<vmem>>, vector<8x784xf32>
    %1 = arith.truncf %0 : vector<8x784xf32> to vector<8x784xbf16>
    %c0_1 = arith.constant 0 : index
    %c0_2 = arith.constant 0 : index
    %2 = vector.load %arg2[%c0_1, %c0_2] : memref<784x64xbf16, #tpu.memory_space<vmem>>, vector<784x64xbf16>
    %cst = arith.constant dense<0.000000e+00> : vector<8x64xf32>
    %3 = tpu.matmul %1, %2, %cst {dimension_numbers = #tpu.dot_dimension_numbers<[1], [0], [0], [1], [0, 0, 1, 1], [], []>} : vector<8x784xbf16>, vector<784x64xbf16>, vector<8x64xf32> -> vector<8x64xf32>
    %c0_3 = arith.constant 0 : index
    %c0_4 = arith.constant 0 : index
    %4 = vector.load %arg3[%c0_3, %c0_4] : memref<1x64xf32, #tpu.memory_space<vmem>>, vector<1x64xf32>
    %5 = vector.broadcast %4 : vector<1x64xf32> to vector<8x64xf32>
    %6 = arith.addf %3, %5 : vector<8x64xf32>
    %cst_5 = arith.constant 0.000000e+00 : f32
    %7 = vector.broadcast %cst_5 : f32 to vector<8x64xf32>
    %8 = arith.maximumf %6, %7 : vector<8x64xf32>
    %9 = arith.truncf %8 : vector<8x64xf32> to vector<8x64xbf16>
    %c0_6 = arith.constant 0 : index
    %c0_7 = arith.constant 0 : index
    %10 = vector.load %arg4[%c0_6, %c0_7] : memref<64x784xbf16, #tpu.memory_space<vmem>>, vector<64x784xbf16>
    %cst_8 = arith.constant dense<0.000000e+00> : vector<8x784xf32>
    %11 = tpu.matmul %9, %10, %cst_8 {dimension_numbers = #tpu.dot_dimension_numbers<[1], [0], [0], [1], [0, 0, 1, 1], [], []>} : vector<8x64xbf16>, vector<64x784xbf16>, vector<8x784xf32> -> vector<8x784xf32>
    %c0_9 = arith.constant 0 : index
    %c0_10 = arith.constant 0 : index
    %12 = vector.load %arg5[%c0_9, %c0_10] : memref<1x784xf32, #tpu.memory_space<vmem>>, vector<1x784xf32>
    %13 = vector.broadcast %12 : vector<1x784xf32> to vector<8x784xf32>
    %14 = arith.addf %11, %13 : vector<8x784xf32>
    %cst_11 = arith.constant 5.000000e-01 : f32
    %15 = vector.broadcast %cst_11 : f32 to vector<8x784xf32>
    %16 = arith.mulf %15, %14 : vector<8x784xf32>
    %17 = math.tanh %16 : vector<8x784xf32>
    %cst_12 = arith.constant 5.000000e-01 : f32
    %18 = vector.broadcast %cst_12 : f32 to vector<8x784xf32>
    %19 = arith.mulf %18, %17 : vector<8x784xf32>
    %cst_13 = arith.constant 5.000000e-01 : f32
    %20 = vector.broadcast %cst_13 : f32 to vector<8x784xf32>
    %21 = arith.addf %19, %20 : vector<8x784xf32>
    %c0_14 = arith.constant 0 : index
    %c0_15 = arith.constant 0 : index
    %22 = vector.load %arg6[%c0_14, %c0_15] : memref<8x784xf32, #tpu.memory_space<vmem>>, vector<8x784xf32>
    tpu.vector_store %arg6[%c0_14, %c0_15], %21 {strides = array<i32>} : memref<8x784xf32, #tpu.memory_space<vmem>>, vector<8x784xf32>,
    return
  }
  func.func @transform_0(%arg0: i32) -> (i32, i32) {
    %c0_i32 = arith.constant 0 : i32
    %c0_i32_0 = arith.constant 0 : i32
    return %arg0, %c0_i32 : i32, i32
  }
  func.func @transform_1(%arg0: i32) -> (i32, i32) {
    %c0_i32 = arith.constant 0 : i32
    %c0_i32_0 = arith.constant 0 : i32
    %c0_i32_1 = arith.constant 0 : i32
    return %c0_i32, %c0_i32_0 : i32, i32
  }
  func.func @transform_2(%arg0: i32) -> (i32, i32) {
    %c0_i32 = arith.constant 0 : i32
    %c0_i32_0 = arith.constant 0 : i32
    %c0_i32_1 = arith.constant 0 : i32
    return %c0_i32, %c0_i32_0 : i32, i32
  }
  func.func @transform_3(%arg0: i32) -> (i32, i32) {
    %c0_i32 = arith.constant 0 : i32
    %c0_i32_0 = arith.constant 0 : i32
    %c0_i32_1 = arith.constant 0 : i32
    return %c0_i32, %c0_i32_0 : i32, i32
  }
  func.func @transform_4(%arg0: i32) -> (i32, i32) {
    %c0_i32 = arith.constant 0 : i32
    %c0_i32_0 = arith.constant 0 : i32
    %c0_i32_1 = arith.constant 0 : i32
    return %c0_i32, %c0_i32_0 : i32, i32
  }
  func.func @transform_5(%arg0: i32) -> (i32, i32) {
    %c0_i32 = arith.constant 0 : i32
    %c0_i32_0 = arith.constant 0 : i32
    return %arg0, %c0_i32 : i32, i32
  }
}

</mosaic_0001>

<llo_original>
// kernel: autoencoder_forward.1
$region0: #{autoencoder_forward.1}
  #allocation0 [shape = 'u32[]', space=smem, size = 0x4, offset = 0x4, fixed_abs, tag = 'smem constant byte address 0x4 - core index']
  #allocation1 [shape = 'u32[144,128]{1,0:T(1,128)}', space=vmem, size = 0x12000, scoped, tag = 'internal scratch']
  %s0 = inlined_call_operand.vmem [shape: f32[8,784], index: 0, kind: input, shape index: {}]
  %s1 = inlined_call_operand.vmem [shape: bf16[784,64], index: 1, kind: input, shape index: {}]
  %s2 = inlined_call_operand.vmem [shape: f32[1,64], index: 2, kind: input, shape index: {}]
  %s3 = inlined_call_operand.vmem [shape: bf16[64,784], index: 3, kind: input, shape index: {}]
  %s4 = inlined_call_operand.vmem [shape: f32[1,784], index: 4, kind: input, shape index: {}]
  %s5 = inlined_call_operand.hbm [shape: f32[8,784], index: 5, kind: output, shape index: {}]
  %s6 = sld [smem:[#allocation0]]
  $region30: #{autoencoder_forward.1} parent=0
    _
  %s8 = ssub.s32 1, %s6
  %s9 = scalar_select 0, %s8, %s6
  $region1: #{autoencoder_forward.1} parent=0
    #allocation2 [shape = 'u8[28672]{0}', space=vmem, size = 0x7000, scoped, tag = 'output window, operand 0, single buffered']
    #allocation3 [shape = 's32[1]{0}', space=sflag, size = 0x4, scoped, tag = 'scoped memory for autoencoder_forward.1']
    %10 = vsyncpa [#allocation3], 0
    // Predicated region
    $region2: #{autoencoder_forward.1} parent=1 // pred_check
      _
    $region3: #{autoencoder_forward.1} parent=1 // pred_check_branch
      %12 = sbr.rel (0) target = $region5
    $region4: #{autoencoder_forward.1} parent=1 // pred_region
      _
    $region5: #{autoencoder_forward.1} parent=1 // pred_fallthru
      _
    // Predicated region
    $region6: #{autoencoder_forward.1} parent=1 // pred_check
      _
    $region7: #{autoencoder_forward.1} parent=1 // pred_check_branch
      %14 = sbr.rel (0) target = $region9
    $region8: #{autoencoder_forward.1} parent=1 // pred_region
      _
    $region9: #{autoencoder_forward.1} parent=1 // pred_fallthru
      _
    // Predicated region
    $region10: #{autoencoder_forward.1} parent=1 // pred_check
      _
    $region11: #{autoencoder_forward.1} parent=1 // pred_check_branch
      %16 = sbr.rel (0) target = $region13
    $region12: #{autoencoder_forward.1} parent=1 // pred_region
      _
    $region13: #{autoencoder_forward.1} parent=1 // pred_fallthru
      _
    // Predicated region
    $region14: #{autoencoder_forward.1} parent=1 // pred_check
      _
    $region15: #{autoencoder_forward.1} parent=1 // pred_check_branch
      %18 = sbr.rel (0) target = $region17
    $region16: #{autoencoder_forward.1} parent=1 // pred_region
      _
    $region17: #{autoencoder_forward.1} parent=1 // pred_fallthru
      _
    // Predicated region
    $region18: #{autoencoder_forward.1} parent=1 // pred_check
      _
    $region19: #{autoencoder_forward.1} parent=1 // pred_check_branch
      %20 = sbr.rel (0) target = $region21
    $region20: #{autoencoder_forward.1} parent=1 // pred_region
      _
    $region21: #{autoencoder_forward.1} parent=1 // pred_fallthru
      _
    %v22 = vld [vmem:[%s0] sm:$0xff]
    %v23 = vld [vmem:[%s0 + $0x8] sm:$0xff]
    %v24 = vld [vmem:[%s0 + $0x10] sm:$0xff]
    %v25 = vld [vmem:[%s0 + $0x18] sm:$0xff]
    %v26 = vld [vmem:[%s0 + $0x20] sm:$0xff]
    %v27 = vld [vmem:[%s0 + $0x28] sm:$0xff]
    %v28 = vld [vmem:[%s0 + $0x30] sm:$0xff]
    %v29 = vpack.c.bf16 %v22, %v22
    %v30 = vpack.c.bf16 %v23, %v23
    %v31 = vpack.c.bf16 %v24, %v24
    %v32 = vpack.c.bf16 %v25, %v25
    %v33 = vpack.c.bf16 %v26, %v26
    %v34 = vpack.c.bf16 %v27, %v27
    %v35 = vpack.c.bf16 %v28, %v28
    %v36 = vld [vmem:[%s1] sm:$0xf]
    %v37 = vld [vmem:[%s1 + $0x4] sm:$0xf]
    %v38 = vld [vmem:[%s1 + $0x8] sm:$0xf]
    %v39 = vld [vmem:[%s1 + $0xc] sm:$0xf]
    %v40 = vld [vmem:[%s1 + $0x10] sm:$0xf]
    %v41 = vld [vmem:[%s1 + $0x14] sm:$0xf]
    %v42 = vld [vmem:[%s1 + $0x18] sm:$0xf]
    %v43 = vld [vmem:[%s1 + $0x1c] sm:$0xf]
    %v44 = vld [vmem:[%s1 + $0x20] sm:$0xf]
    %v45 = vld [vmem:[%s1 + $0x24] sm:$0xf]
    %v46 = vld [vmem:[%s1 + $0x28] sm:$0xf]
    %v47 = vld [vmem:[%s1 + $0x2c] sm:$0xf]
    %v48 = vld [vmem:[%s1 + $0x30] sm:$0xf]
    %v49 = vld [vmem:[%s1 + $0x34] sm:$0xf]
    %v50 = vld [vmem:[%s1 + $0x38] sm:$0xf]
    %v51 = vld [vmem:[%s1 + $0x3c] sm:$0xf]
    %v52 = vld [vmem:[%s1 + $0x40] sm:$0xf]
    %v53 = vld [vmem:[%s1 + $0x44] sm:$0xf]
    %v54 = vld [vmem:[%s1 + $0x48] sm:$0xf]
    %v55 = vld [vmem:[%s1 + $0x4c] sm:$0xf]
    %v56 = vld [vmem:[%s1 + $0x50] sm:$0xf]
    %v57 = vld [vmem:[%s1 + $0x54] sm:$0xf]
    %v58 = vld [vmem:[%s1 + $0x58] sm:$0xf]
    %v59 = vld [vmem:[%s1 + $0x5c] sm:$0xf]
    %v60 = vld [vmem:[%s1 + $0x60] sm:$0xf]
    %v61 = vld [vmem:[%s1 + $0x64] sm:$0xf]
    %v62 = vld [vmem:[%s1 + $0x68] sm:$0xf]
    %v63 = vld [vmem:[%s1 + $0x6c] sm:$0xf]
    %v64 = vld [vmem:[%s1 + $0x70] sm:$0xf]
    %v65 = vld [vmem:[%s1 + $0x74] sm:$0xf]
    %v66 = vld [vmem:[%s1 + $0x78] sm:$0xf]
    %v67 = vld [vmem:[%s1 + $0x7c] sm:$0xf]
    %v68 = vld [vmem:[%s1 + $0x80] sm:$0xf]
    %v69 = vld [vmem:[%s1 + $0x84] sm:$0xf]
    %v70 = vld [vmem:[%s1 + $0x88] sm:$0xf]
    %v71 = vld [vmem:[%s1 + $0x8c] sm:$0xf]
    %v72 = vld [vmem:[%s1 + $0x90] sm:$0xf]
    %v73 = vld [vmem:[%s1 + $0x94] sm:$0xf]
    %v74 = vld [vmem:[%s1 + $0x98] sm:$0xf]
    %v75 = vld [vmem:[%s1 + $0x9c] sm:$0xf]
    %v76 = vld [vmem:[%s1 + $0xa0] sm:$0xf]
    %v77 = vld [vmem:[%s1 + $0xa4] sm:$0xf]
    %v78 = vld [vmem:[%s1 + $0xa8] sm:$0xf]
    %v79 = vld [vmem:[%s1 + $0xac] sm:$0xf]
    %v80 = vld [vmem:[%s1 + $0xb0] sm:$0xf]
    %v81 = vld [vmem:[%s1 + $0xb4] sm:$0xf]
    %v82 = vld [vmem:[%s1 + $0xb8] sm:$0xf]
    %v83 = vld [vmem:[%s1 + $0xbc] sm:$0xf]
    %v84 = vld [vmem:[%s1 + $0xc0] sm:$0xf]
    %v85 = vld [vmem:[%s1 + $0xc4] sm:$0xf]
    %v86 = vld [vmem:[%s1 + $0xc8] sm:$0xf]
    %v87 = vld [vmem:[%s1 + $0xcc] sm:$0xf]
    %v88 = vld [vmem:[%s1 + $0xd0] sm:$0xf]
    %v89 = vld [vmem:[%s1 + $0xd4] sm:$0xf]
    %v90 = vld [vmem:[%s1 + $0xd8] sm:$0xf]
    %v91 = vld [vmem:[%s1 + $0xdc] sm:$0xf]
    %v92 = vld [vmem:[%s1 + $0xe0] sm:$0xf]
    %v93 = vld [vmem:[%s1 + $0xe4] sm:$0xf]
    %v94 = vld [vmem:[%s1 + $0xe8] sm:$0xf]
    %v95 = vld [vmem:[%s1 + $0xec] sm:$0xf]
    %v96 = vld [vmem:[%s1 + $0xf0] sm:$0xf]
    %v97 = vld [vmem:[%s1 + $0xf4] sm:$0xf]
    %v98 = vld [vmem:[%s1 + $0xf8] sm:$0xf]
    %v99 = vld [vmem:[%s1 + $0xfc] sm:$0xf]
    %v100 = vld [vmem:[%s1 + $0x100] sm:$0xf]
    %v101 = vld [vmem:[%s1 + $0x104] sm:$0xf]
    %v102 = vld [vmem:[%s1 + $0x108] sm:$0xf]
    %v103 = vld [vmem:[%s1 + $0x10c] sm:$0xf]
    %v104 = vld [vmem:[%s1 + $0x110] sm:$0xf]
    %v105 = vld [vmem:[%s1 + $0x114] sm:$0xf]
    %v106 = vld [vmem:[%s1 + $0x118] sm:$0xf]
    %v107 = vld [vmem:[%s1 + $0x11c] sm:$0xf]
    %v108 = vld [vmem:[%s1 + $0x120] sm:$0xf]
    %v109 = vld [vmem:[%s1 + $0x124] sm:$0xf]
    %v110 = vld [vmem:[%s1 + $0x128] sm:$0xf]
    %v111 = vld [vmem:[%s1 + $0x12c] sm:$0xf]
    %v112 = vld [vmem:[%s1 + $0x130] sm:$0xf]
    %v113 = vld [vmem:[%s1 + $0x134] sm:$0xf]
    %v114 = vld [vmem:[%s1 + $0x138] sm:$0xf]
    %v115 = vld [vmem:[%s1 + $0x13c] sm:$0xf]
    %v116 = vld [vmem:[%s1 + $0x140] sm:$0xf]
    %v117 = vld [vmem:[%s1 + $0x144] sm:$0xf]
    %v118 = vld [vmem:[%s1 + $0x148] sm:$0xf]
    %v119 = vld [vmem:[%s1 + $0x14c] sm:$0xf]
    %v120 = vld [vmem:[%s1 + $0x150] sm:$0xf]
    %v121 = vld [vmem:[%s1 + $0x154] sm:$0xf]
    %v122 = vld [vmem:[%s1 + $0x158] sm:$0xf]
    %v123 = vld [vmem:[%s1 + $0x15c] sm:$0xf]
    %v124 = vld [vmem:[%s1 + $0x160] sm:$0xf]
    %v125 = vld [vmem:[%s1 + $0x164] sm:$0xf]
    %v126 = vld [vmem:[%s1 + $0x168] sm:$0xf]
    %v127 = vld [vmem:[%s1 + $0x16c] sm:$0xf]
    %v128 = vld [vmem:[%s1 + $0x170] sm:$0xf]
    %v129 = vld [vmem:[%s1 + $0x174] sm:$0xf]
    %v130 = vld [vmem:[%s1 + $0x178] sm:$0xf]
    %v131 = vld [vmem:[%s1 + $0x17c] sm:$0xf]
    %v132 = vld [vmem:[%s1 + $0x180] sm:$0xf]
    %v133 = vld [vmem:[%s1 + $0x184] sm:$0xf]
    %v134 = vld [vmem:[%s2] sm:$0x1]
    %v136 = vlaneseq
    %v137 = vshrl.u32 %v136, 7
    %v138 = vsub.s32 0, %v137
    %v139 = vrot.slane %v134, %v138
    %v239 = vunpack.c.l.b16 %v36
    %v240 = vunpack.c.l.b16 %v37
    %v241 = vunpack.c.l.b16 %v38
    %v242 = vunpack.c.l.b16 %v39
    %v243 = vunpack.c.l.b16 %v40
    %v244 = vunpack.c.l.b16 %v41
    %v245 = vunpack.c.l.b16 %v42
    %v246 = vunpack.c.l.b16 %v43
    %v247 = vunpack.c.l.b16 %v44
    %v248 = vunpack.c.l.b16 %v45
    %v249 = vunpack.c.l.b16 %v46
    %v250 = vunpack.c.l.b16 %v47
    %v251 = vunpack.c.l.b16 %v48
    %v252 = vunpack.c.l.b16 %v49
    %v253 = vunpack.c.l.b16 %v50
    %v254 = vunpack.c.l.b16 %v51
    %v255 = vunpack.c.l.b16 %v52
    %v256 = vunpack.c.l.b16 %v53
    %v257 = vunpack.c.l.b16 %v54
    %v258 = vunpack.c.l.b16 %v55
    %v259 = vunpack.c.l.b16 %v56
    %v260 = vunpack.c.l.b16 %v57
    %v261 = vunpack.c.l.b16 %v58
    %v262 = vunpack.c.l.b16 %v59
    %v263 = vunpack.c.l.b16 %v60
    %v264 = vunpack.c.l.b16 %v61
    %v265 = vunpack.c.l.b16 %v62
    %v266 = vunpack.c.l.b16 %v63
    %v267 = vunpack.c.l.b16 %v64
    %v268 = vunpack.c.l.b16 %v65
    %v269 = vunpack.c.l.b16 %v66
    %v270 = vunpack.c.l.b16 %v67
    %v271 = vunpack.c.l.b16 %v68
    %v272 = vunpack.c.l.b16 %v69
    %v273 = vunpack.c.l.b16 %v70
    %v274 = vunpack.c.l.b16 %v71
    %v275 = vunpack.c.l.b16 %v72
    %v276 = vunpack.c.l.b16 %v73
    %v277 = vunpack.c.l.b16 %v74
    %v278 = vunpack.c.l.b16 %v75
    %v279 = vunpack.c.l.b16 %v76
    %v280 = vunpack.c.l.b16 %v77
    %v281 = vunpack.c.l.b16 %v78
    %v282 = vunpack.c.l.b16 %v79
    %v283 = vunpack.c.l.b16 %v80
    %v284 = vunpack.c.l.b16 %v81
    %v285 = vunpack.c.l.b16 %v82
    %v286 = vunpack.c.l.b16 %v83
    %v287 = vunpack.c.l.b16 %v84
    %v288 = vunpack.c.l.b16 %v85
    %v289 = vunpack.c.l.b16 %v86
    %v290 = vunpack.c.l.b16 %v87
    %v291 = vunpack.c.l.b16 %v88
    %v292 = vunpack.c.l.b16 %v89
    %v293 = vunpack.c.l.b16 %v90
    %v294 = vunpack.c.l.b16 %v91
    %v295 = vunpack.c.l.b16 %v92
    %v296 = vunpack.c.l.b16 %v93
    %v297 = vunpack.c.l.b16 %v94
    %v298 = vunpack.c.l.b16 %v95
    %v299 = vunpack.c.l.b16 %v96
    %v300 = vunpack.c.l.b16 %v97
    %v301 = vunpack.c.l.b16 %v98
    %v302 = vunpack.c.l.b16 %v99
    %v303 = vunpack.c.l.b16 %v100
    %v304 = vunpack.c.l.b16 %v101
    %v305 = vunpack.c.l.b16 %v102
    %v306 = vunpack.c.l.b16 %v103
    %v307 = vunpack.c.l.b16 %v104
    %v308 = vunpack.c.l.b16 %v105
    %v309 = vunpack.c.l.b16 %v106
    %v310 = vunpack.c.l.b16 %v107
    %v311 = vunpack.c.l.b16 %v108
    %v312 = vunpack.c.l.b16 %v109
    %v313 = vunpack.c.l.b16 %v110
    %v314 = vunpack.c.l.b16 %v111
    %v315 = vunpack.c.l.b16 %v112
    %v316 = vunpack.c.l.b16 %v113
    %v317 = vunpack.c.l.b16 %v114
    %v318 = vunpack.c.l.b16 %v115
    %v319 = vunpack.c.l.b16 %v116
    %v320 = vunpack.c.l.b16 %v117
    %v321 = vunpack.c.l.b16 %v118
    %v322 = vunpack.c.l.b16 %v119
    %v323 = vunpack.c.l.b16 %v120
    %v324 = vunpack.c.l.b16 %v121
    %v325 = vunpack.c.l.b16 %v122
    %v326 = vunpack.c.l.b16 %v123
    %v327 = vunpack.c.l.b16 %v124
    %v328 = vunpack.c.l.b16 %v125
    %v329 = vunpack.c.l.b16 %v126
    %v330 = vunpack.c.l.b16 %v127
    %v331 = vunpack.c.l.b16 %v128
    %v332 = vunpack.c.l.b16 %v129
    %v333 = vunpack.c.l.b16 %v130
    %v334 = vunpack.c.l.b16 %v131
    %v335 = vunpack.c.l.b16 %v132
    %v336 = vunpack.c.l.b16 %v133
    %v337 = vpack.c.b16 %v240, %v239
    %v338 = vpack.c.b16 %v242, %v241
    %v339 = vpack.c.b16 %v244, %v243
    %v340 = vpack.c.b16 %v246, %v245
    %v341 = vpack.c.b16 %v248, %v247
    %v342 = vpack.c.b16 %v250, %v249
    %v343 = vpack.c.b16 %v252, %v251
    %v344 = vpack.c.b16 %v254, %v253
    %v345 = vpack.c.b16 %v256, %v255
    %v346 = vpack.c.b16 %v258, %v257
    %v347 = vpack.c.b16 %v260, %v259
    %v348 = vpack.c.b16 %v262, %v261
    %v349 = vpack.c.b16 %v264, %v263
    %v350 = vpack.c.b16 %v266, %v265
    %v351 = vpack.c.b16 %v268, %v267
    %v352 = vpack.c.b16 %v270, %v269
    %v353 = vpack.c.b16 %v272, %v271
    %v354 = vpack.c.b16 %v274, %v273
    %v355 = vpack.c.b16 %v276, %v275
    %v356 = vpack.c.b16 %v278, %v277
    %v357 = vpack.c.b16 %v280, %v279
    %v358 = vpack.c.b16 %v282, %v281
    %v359 = vpack.c.b16 %v284, %v283
    %v360 = vpack.c.b16 %v286, %v285
    %v361 = vpack.c.b16 %v288, %v287
    %v362 = vpack.c.b16 %v290, %v289
    %v363 = vpack.c.b16 %v292, %v291
    %v364 = vpack.c.b16 %v294, %v293
    %v365 = vpack.c.b16 %v296, %v295
    %v366 = vpack.c.b16 %v298, %v297
    %v367 = vpack.c.b16 %v300, %v299
    %v368 = vpack.c.b16 %v302, %v301
    %v369 = vpack.c.b16 %v304, %v303
    %v370 = vpack.c.b16 %v306, %v305
    %v371 = vpack.c.b16 %v308, %v307
    %v372 = vpack.c.b16 %v310, %v309
    %v373 = vpack.c.b16 %v312, %v311
    %v374 = vpack.c.b16 %v314, %v313
    %v375 = vpack.c.b16 %v316, %v315
    %v376 = vpack.c.b16 %v318, %v317
    %v377 = vpack.c.b16 %v320, %v319
    %v378 = vpack.c.b16 %v322, %v321
    %v379 = vpack.c.b16 %v324, %v323
    %v380 = vpack.c.b16 %v326, %v325
    %v381 = vpack.c.b16 %v328, %v327
    %v382 = vpack.c.b16 %v330, %v329
    %v383 = vpack.c.b16 %v332, %v331
    %v384 = vpack.c.b16 %v334, %v333
    %v385 = vpack.c.b16 %v336, %v335
    %vm435 = vcmask 130048
    %v437 = vsel %vm435, %v35, 0
    %439 = vmatprep.subr.bf16.mxu0 0
    %440 = vmatpush1.bf16.msra.mxu0 %v344
    %441 = vmatprep.subr.bf16.mxu0 0
    %442 = vmatpush1.bf16.msra.mxu0 %v343
    %443 = vmatprep.subr.bf16.mxu0 0
    %444 = vmatpush1.bf16.msra.mxu0 %v342
    %445 = vmatprep.subr.bf16.mxu0 0
    %446 = vmatpush1.bf16.msra.mxu0 %v341
    %447 = vmatprep.subr.bf16.mxu0 0
    %448 = vmatpush1.bf16.msra.mxu0 %v340
    %449 = vmatprep.subr.bf16.mxu0 0
    %450 = vmatpush1.bf16.msra.mxu0 %v339
    %451 = vmatprep.subr.bf16.mxu0 0
    %452 = vmatpush1.bf16.msra.mxu0 %v338
    %453 = vmatprep.subr.bf16.mxu0 0
    %454 = vmatpush1.bf16.msra.mxu0 %v337
    %455 = vmatprep.subr.bf16.mxu0 0
    %456 = vmatpush2.bf16.msra.mxu0 %v352
    %457 = vmatprep.subr.bf16.mxu0 0
    %458 = vmatpush2.bf16.msra.mxu0 %v351
    %459 = vmatprep.subr.bf16.mxu0 0
    %460 = vmatpush2.bf16.msra.mxu0 %v350
    %461 = vmatprep.subr.bf16.mxu0 0
    %462 = vmatpush2.bf16.msra.mxu0 %v349
    %463 = vmatprep.subr.bf16.mxu0 0
    %464 = vmatpush2.bf16.msra.mxu0 %v348
    %465 = vmatprep.subr.bf16.mxu0 0
    %466 = vmatpush2.bf16.msra.mxu0 %v347
    %467 = vmatprep.subr.bf16.mxu0 0
    %468 = vmatpush2.bf16.msra.mxu0 %v346
    %469 = vmatprep.subr.bf16.mxu0 0
    %470 = vmatpush2.bf16.msra.mxu0 %v345
    %471 = vmatprep.mubr.bf16.mxu0 %v30
    %472 = vmatmul.mubr.bf16.gmra.mxu0 %v29
    %v473 = vpop.f32.mrf.mxu0
    %v474 = vadd.f32 %v139, %v473
    %v475 = vpop.f32.mrf.mxu0
    %v476 = vpop.f32.mrf.mxu0
    %v477 = vpop.f32.mrf.mxu0
    %478 = vdwg.mxu0
    %479 = vmatprep.subr.bf16.mxu0 0
    %480 = vmatpush1.bf16.msra.mxu0 %v360
    %481 = vmatprep.subr.bf16.mxu0 0
    %482 = vmatpush1.bf16.msra.mxu0 %v359
    %483 = vmatprep.subr.bf16.mxu0 0
    %484 = vmatpush1.bf16.msra.mxu0 %v358
    %485 = vmatprep.subr.bf16.mxu0 0
    %486 = vmatpush1.bf16.msra.mxu0 %v357
    %487 = vmatprep.subr.bf16.mxu0 0
    %488 = vmatpush1.bf16.msra.mxu0 %v356
    %489 = vmatprep.subr.bf16.mxu0 0
    %490 = vmatpush1.bf16.msra.mxu0 %v355
    %491 = vmatprep.subr.bf16.mxu0 0
    %492 = vmatpush1.bf16.msra.mxu0 %v354
    %493 = vmatprep.subr.bf16.mxu0 0
    %494 = vmatpush1.bf16.msra.mxu0 %v353
    %495 = vmatprep.subr.bf16.mxu0 0
    %496 = vmatpush2.bf16.msra.mxu0 %v368
    %497 = vmatprep.subr.bf16.mxu0 0
    %498 = vmatpush2.bf16.msra.mxu0 %v367
    %499 = vmatprep.subr.bf16.mxu0 0
    %500 = vmatpush2.bf16.msra.mxu0 %v366
    %501 = vmatprep.subr.bf16.mxu0 0
    %502 = vmatpush2.bf16.msra.mxu0 %v365
    %503 = vmatprep.subr.bf16.mxu0 0
    %504 = vmatpush2.bf16.msra.mxu0 %v364
    %505 = vmatprep.subr.bf16.mxu0 0
    %506 = vmatpush2.bf16.msra.mxu0 %v363
    %507 = vmatprep.subr.bf16.mxu0 0
    %508 = vmatpush2.bf16.msra.mxu0 %v362
    %509 = vmatprep.subr.bf16.mxu0 0
    %510 = vmatpush2.bf16.msra.mxu0 %v361
    %511 = vmatprep.mubr.bf16.mxu0 %v32
    %512 = vmatmul.mubr.bf16.gmra.mxu0 %v31
    %v513 = vpop.f32.mrf.mxu0
    %v514 = vadd.f32 %v474, %v513
    %v515 = vpop.f32.mrf.mxu0
    %v516 = vpop.f32.mrf.mxu0
    %v517 = vpop.f32.mrf.mxu0
    %518 = vdwg.mxu0
    %519 = vmatprep.subr.bf16.mxu0 0
    %520 = vmatpush1.bf16.msra.mxu0 %v376
    %521 = vmatprep.subr.bf16.mxu0 0
    %522 = vmatpush1.bf16.msra.mxu0 %v375
    %523 = vmatprep.subr.bf16.mxu0 0
    %524 = vmatpush1.bf16.msra.mxu0 %v374
    %525 = vmatprep.subr.bf16.mxu0 0
    %526 = vmatpush1.bf16.msra.mxu0 %v373
    %527 = vmatprep.subr.bf16.mxu0 0
    %528 = vmatpush1.bf16.msra.mxu0 %v372
    %529 = vmatprep.subr.bf16.mxu0 0
    %530 = vmatpush1.bf16.msra.mxu0 %v371
    %531 = vmatprep.subr.bf16.mxu0 0
    %532 = vmatpush1.bf16.msra.mxu0 %v370
    %533 = vmatprep.subr.bf16.mxu0 0
    %534 = vmatpush1.bf16.msra.mxu0 %v369
    %535 = vmatprep.subr.bf16.mxu0 0
    %536 = vmatpush2.bf16.msra.mxu0 %v384
    %537 = vmatprep.subr.bf16.mxu0 0
    %538 = vmatpush2.bf16.msra.mxu0 %v383
    %539 = vmatprep.subr.bf16.mxu0 0
    %540 = vmatpush2.bf16.msra.mxu0 %v382
    %541 = vmatprep.subr.bf16.mxu0 0
    %542 = vmatpush2.bf16.msra.mxu0 %v381
    %543 = vmatprep.subr.bf16.mxu0 0
    %544 = vmatpush2.bf16.msra.mxu0 %v380
    %545 = vmatprep.subr.bf16.mxu0 0
    %546 = vmatpush2.bf16.msra.mxu0 %v379
    %547 = vmatprep.subr.bf16.mxu0 0
    %548 = vmatpush2.bf16.msra.mxu0 %v378
    %549 = vmatprep.subr.bf16.mxu0 0
    %550 = vmatpush2.bf16.msra.mxu0 %v377
    %551 = vmatprep.mubr.bf16.mxu0 %v34
    %552 = vmatmul.mubr.bf16.gmra.mxu0 %v33
    %v553 = vpop.f32.mrf.mxu0
    %v554 = vadd.f32 %v514, %v553
    %v555 = vpop.f32.mrf.mxu0
    %v556 = vpop.f32.mrf.mxu0
    %v557 = vpop.f32.mrf.mxu0
    %558 = vdwg.mxu0
    %559 = vmatprep.subr.bf16.mxu0 0
    %560 = vmatpush1.bf16.msra.mxu0 0
    %561 = vmatprep.subr.bf16.mxu0 0
    %562 = vmatpush1.bf16.msra.mxu0 0
    %563 = vmatprep.subr.bf16.mxu0 0
    %564 = vmatpush1.bf16.msra.mxu0 0
    %565 = vmatprep.subr.bf16.mxu0 0
    %566 = vmatpush1.bf16.msra.mxu0 0
    %567 = vmatprep.subr.bf16.mxu0 0
    %568 = vmatpush1.bf16.msra.mxu0 0
    %569 = vmatprep.subr.bf16.mxu0 0
    %570 = vmatpush1.bf16.msra.mxu0 0
    %571 = vmatprep.subr.bf16.mxu0 0
    %572 = vmatpush1.bf16.msra.mxu0 0
    %573 = vmatprep.subr.bf16.mxu0 0
    %574 = vmatpush1.bf16.msra.mxu0 %v385
    %575 = vmatprep.subr.bf16.mxu0 0
    %576 = vmatpush2.bf16.msra.mxu0 0
    %577 = vmatprep.subr.bf16.mxu0 0
    %578 = vmatpush2.bf16.msra.mxu0 0
    %579 = vmatprep.subr.bf16.mxu0 0
    %580 = vmatpush2.bf16.msra.mxu0 0
    %581 = vmatprep.subr.bf16.mxu0 0
    %582 = vmatpush2.bf16.msra.mxu0 0
    %583 = vmatprep.subr.bf16.mxu0 0
    %584 = vmatpush2.bf16.msra.mxu0 0
    %585 = vmatprep.subr.bf16.mxu0 0
    %586 = vmatpush2.bf16.msra.mxu0 0
    %587 = vmatprep.subr.bf16.mxu0 0
    %588 = vmatpush2.bf16.msra.mxu0 0
    %589 = vmatprep.subr.bf16.mxu0 0
    %590 = vmatpush2.bf16.msra.mxu0 0
    %591 = vmatprep.mubr.bf16.mxu0 0
    %592 = vmatmul.mubr.bf16.gmra.mxu0 %v437
    %v593 = vpop.f32.mrf.mxu0
    %v594 = vadd.f32 %v554, %v593
    %v595 = vpop.f32.mrf.mxu0
    %v596 = vpop.f32.mrf.mxu0
    %v597 = vpop.f32.mrf.mxu0
    %598 = vdwg.mxu0
    %v599 = vmax.f32 %v594, 0.0
    %v600 = vpack.c.bf16 %v599, %v599
    %v601 = vld [vmem:[%s3] sm:$0xff]
    %v602 = vld [vmem:[%s3 + $0x8] sm:$0xff]
    %v603 = vld [vmem:[%s3 + $0x10] sm:$0xff]
    %v604 = vld [vmem:[%s3 + $0x18] sm:$0xf]
    %v605 = vld [vmem:[%s3 + $0x1c] sm:$0xff]
    %v606 = vld [vmem:[%s3 + $0x24] sm:$0xff]
    %v607 = vld [vmem:[%s3 + $0x2c] sm:$0xff]
    %v608 = vld [vmem:[%s3 + $0x34] sm:$0xf]
    %v609 = vld [vmem:[%s3 + $0x38] sm:$0xff]
    %v610 = vld [vmem:[%s3 + $0x40] sm:$0xff]
    %v611 = vld [vmem:[%s3 + $0x48] sm:$0xff]
    %v612 = vld [vmem:[%s3 + $0x50] sm:$0xf]
    %v613 = vld [vmem:[%s3 + $0x54] sm:$0xff]
    %v614 = vld [vmem:[%s3 + $0x5c] sm:$0xff]
    %v615 = vld [vmem:[%s3 + $0x64] sm:$0xff]
    %v616 = vld [vmem:[%s3 + $0x6c] sm:$0xf]
    %v617 = vld [vmem:[%s3 + $0x70] sm:$0xff]
    %v618 = vld [vmem:[%s3 + $0x78] sm:$0xff]
    %v619 = vld [vmem:[%s3 + $0x80] sm:$0xff]
    %v620 = vld [vmem:[%s3 + $0x88] sm:$0xf]
    %v621 = vld [vmem:[%s3 + $0x8c] sm:$0xff]
    %v622 = vld [vmem:[%s3 + $0x94] sm:$0xff]
    %v623 = vld [vmem:[%s3 + $0x9c] sm:$0xff]
    %v624 = vld [vmem:[%s3 + $0xa4] sm:$0xf]
    %v625 = vld [vmem:[%s3 + $0xa8] sm:$0xff]
    %v626 = vld [vmem:[%s3 + $0xb0] sm:$0xff]
    %v627 = vld [vmem:[%s3 + $0xb8] sm:$0xff]
    %v628 = vld [vmem:[%s3 + $0xc0] sm:$0xf]
    %v629 = vld [vmem:[%s3 + $0xc4] sm:$0xff]
    %v630 = vld [vmem:[%s3 + $0xcc] sm:$0xff]
    %v631 = vld [vmem:[%s3 + $0xd4] sm:$0xff]
    %v632 = vld [vmem:[%s3 + $0xdc] sm:$0xf]
    %v633 = vld [vmem:[%s4] sm:$0x7f]
    %v635 = vlaneseq
    %v636 = vshrl.u32 %v635, 7
    %v637 = vsub.s32 0, %v636
    %v638 = vrot.slane %v633, %v637
    %v639 = vlaneseq
    %v640 = vshrl.u32 %v639, 7
    %v641 = vsub.s32 1, %v640
    %v642 = vrot.slane %v633, %v641
    %v643 = vlaneseq
    %v644 = vshrl.u32 %v643, 7
    %v645 = vsub.s32 2, %v644
    %v646 = vrot.slane %v633, %v645
    %v647 = vlaneseq
    %v648 = vshrl.u32 %v647, 7
    %v649 = vsub.s32 3, %v648
    %v650 = vrot.slane %v633, %v649
    %v651 = vlaneseq
    %v652 = vshrl.u32 %v651, 7
    %v653 = vsub.s32 4, %v652
    %v654 = vrot.slane %v633, %v653
    %v655 = vlaneseq
    %v656 = vshrl.u32 %v655, 7
    %v657 = vsub.s32 5, %v656
    %v658 = vrot.slane %v633, %v657
    %v659 = vlaneseq
    %v660 = vshrl.u32 %v659, 7
    %v661 = vsub.s32 6, %v660
    %v662 = vrot.slane %v633, %v661
    %v702 = vunpack.c.l.b16 %v601
    %v703 = vunpack.c.h.b16 %v601
    %v704 = vunpack.c.l.b16 %v602
    %v705 = vunpack.c.h.b16 %v602
    %v706 = vunpack.c.l.b16 %v603
    %v707 = vunpack.c.h.b16 %v603
    %v708 = vunpack.c.l.b16 %v604
    %v709 = vunpack.c.l.b16 %v605
    %v710 = vunpack.c.h.b16 %v605
    %v711 = vunpack.c.l.b16 %v606
    %v712 = vunpack.c.h.b16 %v606
    %v713 = vunpack.c.l.b16 %v607
    %v714 = vunpack.c.h.b16 %v607
    %v715 = vunpack.c.l.b16 %v608
    %v716 = vunpack.c.l.b16 %v609
    %v717 = vunpack.c.h.b16 %v609
    %v718 = vunpack.c.l.b16 %v610
    %v719 = vunpack.c.h.b16 %v610
    %v720 = vunpack.c.l.b16 %v611
    %v721 = vunpack.c.h.b16 %v611
    %v722 = vunpack.c.l.b16 %v612
    %v723 = vunpack.c.l.b16 %v613
    %v724 = vunpack.c.h.b16 %v613
    %v725 = vunpack.c.l.b16 %v614
    %v726 = vunpack.c.h.b16 %v614
    %v727 = vunpack.c.l.b16 %v615
    %v728 = vunpack.c.h.b16 %v615
    %v729 = vunpack.c.l.b16 %v616
    %v730 = vunpack.c.l.b16 %v617
    %v731 = vunpack.c.h.b16 %v617
    %v732 = vunpack.c.l.b16 %v618
    %v733 = vunpack.c.h.b16 %v618
    %v734 = vunpack.c.l.b16 %v619
    %v735 = vunpack.c.h.b16 %v619
    %v736 = vunpack.c.l.b16 %v620
    %v737 = vunpack.c.l.b16 %v621
    %v738 = vunpack.c.h.b16 %v621
    %v739 = vunpack.c.l.b16 %v622
    %v740 = vunpack.c.h.b16 %v622
    %v741 = vunpack.c.l.b16 %v623
    %v742 = vunpack.c.h.b16 %v623
    %v743 = vunpack.c.l.b16 %v624
    %v744 = vunpack.c.l.b16 %v625
    %v745 = vunpack.c.h.b16 %v625
    %v746 = vunpack.c.l.b16 %v626
    %v747 = vunpack.c.h.b16 %v626
    %v748 = vunpack.c.l.b16 %v627
    %v749 = vunpack.c.h.b16 %v627
    %v750 = vunpack.c.l.b16 %v628
    %v751 = vunpack.c.l.b16 %v629
    %v752 = vunpack.c.h.b16 %v629
    %v753 = vunpack.c.l.b16 %v630
    %v754 = vunpack.c.h.b16 %v630
    %v755 = vunpack.c.l.b16 %v631
    %v756 = vunpack.c.h.b16 %v631
    %v757 = vunpack.c.l.b16 %v632
    %v758 = vpack.c.b16 %v709, %v702
    %v759 = vpack.c.b16 %v710, %v703
    %v760 = vpack.c.b16 %v711, %v704
    %v761 = vpack.c.b16 %v712, %v705
    %v762 = vpack.c.b16 %v713, %v706
    %v763 = vpack.c.b16 %v714, %v707
    %v764 = vpack.c.b16 %v715, %v708
    %v765 = vpack.c.b16 %v723, %v716
    %v766 = vpack.c.b16 %v724, %v717
    %v767 = vpack.c.b16 %v725, %v718
    %v768 = vpack.c.b16 %v726, %v719
    %v769 = vpack.c.b16 %v727, %v720
    %v770 = vpack.c.b16 %v728, %v721
    %v771 = vpack.c.b16 %v729, %v722
    %v772 = vpack.c.b16 %v737, %v730
    %v773 = vpack.c.b16 %v738, %v731
    %v774 = vpack.c.b16 %v739, %v732
    %v775 = vpack.c.b16 %v740, %v733
    %v776 = vpack.c.b16 %v741, %v734
    %v777 = vpack.c.b16 %v742, %v735
    %v778 = vpack.c.b16 %v743, %v736
    %v779 = vpack.c.b16 %v751, %v744
    %v780 = vpack.c.b16 %v752, %v745
    %v781 = vpack.c.b16 %v753, %v746
    %v782 = vpack.c.b16 %v754, %v747
    %v783 = vpack.c.b16 %v755, %v748
    %v784 = vpack.c.b16 %v756, %v749
    %v785 = vpack.c.b16 %v757, %v750
    %vm814 = vcmask 523264
    %v816 = vsel %vm814, %v600, 0
    %818 = vmatprep.subr.bf16.mxu0 0
    %819 = vmatpush1.bf16.msra.mxu0 0
    %820 = vmatprep.subr.bf16.mxu0 0
    %821 = vmatpush1.bf16.msra.mxu0 0
    %822 = vmatprep.subr.bf16.mxu0 0
    %823 = vmatpush1.bf16.msra.mxu0 0
    %824 = vmatprep.subr.bf16.mxu0 0
    %825 = vmatpush1.bf16.msra.mxu0 0
    %826 = vmatprep.subr.bf16.mxu0 %v780
    %827 = vmatpush1.bf16.msra.mxu0 %v779
    %828 = vmatprep.subr.bf16.mxu0 %v773
    %829 = vmatpush1.bf16.msra.mxu0 %v772
    %830 = vmatprep.subr.bf16.mxu0 %v766
    %831 = vmatpush1.bf16.msra.mxu0 %v765
    %832 = vmatprep.subr.bf16.mxu0 %v759
    %833 = vmatpush1.bf16.msra.mxu0 %v758
    %834 = vmatprep.subr.bf16.mxu0 0
    %835 = vmatpush2.bf16.msra.mxu0 0
    %836 = vmatprep.subr.bf16.mxu0 0
    %837 = vmatpush2.bf16.msra.mxu0 0
    %838 = vmatprep.subr.bf16.mxu0 0
    %839 = vmatpush2.bf16.msra.mxu0 0
    %840 = vmatprep.subr.bf16.mxu0 0
    %841 = vmatpush2.bf16.msra.mxu0 0
    %842 = vmatprep.subr.bf16.mxu0 0
    %843 = vmatpush2.bf16.msra.mxu0 0
    %844 = vmatprep.subr.bf16.mxu0 0
    %845 = vmatpush2.bf16.msra.mxu0 0
    %846 = vmatprep.subr.bf16.mxu0 0
    %847 = vmatpush2.bf16.msra.mxu0 0
    %848 = vmatprep.subr.bf16.mxu0 0
    %849 = vmatpush2.bf16.msra.mxu0 0
    %850 = vmatprep.mubr.bf16.mxu0 0
    %851 = vmatmul.mubr.bf16.gmra.mxu0 %v816
    %v852 = vpop.f32.mrf.mxu0
    %v853 = vadd.f32 %v638, %v852
    %v854 = vpop.f32.mrf.mxu0
    %v855 = vadd.f32 %v642, %v854
    %v856 = vpop.f32.mrf.mxu0
    %v857 = vpop.f32.mrf.mxu0
    %858 = vdwg.mxu0
    %859 = vmatprep.subr.bf16.mxu0 0
    %860 = vmatpush1.bf16.msra.mxu0 0
    %861 = vmatprep.subr.bf16.mxu0 0
    %862 = vmatpush1.bf16.msra.mxu0 0
    %863 = vmatprep.subr.bf16.mxu0 0
    %864 = vmatpush1.bf16.msra.mxu0 0
    %865 = vmatprep.subr.bf16.mxu0 0
    %866 = vmatpush1.bf16.msra.mxu0 0
    %867 = vmatprep.subr.bf16.mxu0 %v782
    %868 = vmatpush1.bf16.msra.mxu0 %v781
    %869 = vmatprep.subr.bf16.mxu0 %v775
    %870 = vmatpush1.bf16.msra.mxu0 %v774
    %871 = vmatprep.subr.bf16.mxu0 %v768
    %872 = vmatpush1.bf16.msra.mxu0 %v767
    %873 = vmatprep.subr.bf16.mxu0 %v761
    %874 = vmatpush1.bf16.msra.mxu0 %v760
    %875 = vmatprep.subr.bf16.mxu0 0
    %876 = vmatpush2.bf16.msra.mxu0 0
    %877 = vmatprep.subr.bf16.mxu0 0
    %878 = vmatpush2.bf16.msra.mxu0 0
    %879 = vmatprep.subr.bf16.mxu0 0
    %880 = vmatpush2.bf16.msra.mxu0 0
    %881 = vmatprep.subr.bf16.mxu0 0
    %882 = vmatpush2.bf16.msra.mxu0 0
    %883 = vmatprep.subr.bf16.mxu0 0
    %884 = vmatpush2.bf16.msra.mxu0 0
    %885 = vmatprep.subr.bf16.mxu0 0
    %886 = vmatpush2.bf16.msra.mxu0 0
    %887 = vmatprep.subr.bf16.mxu0 0
    %888 = vmatpush2.bf16.msra.mxu0 0
    %889 = vmatprep.subr.bf16.mxu0 0
    %890 = vmatpush2.bf16.msra.mxu0 0
    %891 = vmatprep.mubr.bf16.mxu0 0
    %892 = vmatmul.mubr.bf16.gmra.mxu0 %v816
    %v893 = vpop.f32.mrf.mxu0
    %v894 = vadd.f32 %v646, %v893
    %v895 = vpop.f32.mrf.mxu0
    %v896 = vadd.f32 %v650, %v895
    %v897 = vpop.f32.mrf.mxu0
    %v898 = vpop.f32.mrf.mxu0
    %899 = vdwg.mxu0
    %900 = vmatprep.subr.bf16.mxu0 0
    %901 = vmatpush1.bf16.msra.mxu0 0
    %902 = vmatprep.subr.bf16.mxu0 0
    %903 = vmatpush1.bf16.msra.mxu0 0
    %904 = vmatprep.subr.bf16.mxu0 0
    %905 = vmatpush1.bf16.msra.mxu0 0
    %906 = vmatprep.subr.bf16.mxu0 0
    %907 = vmatpush1.bf16.msra.mxu0 0
    %908 = vmatprep.subr.bf16.mxu0 %v784
    %909 = vmatpush1.bf16.msra.mxu0 %v783
    %910 = vmatprep.subr.bf16.mxu0 %v777
    %911 = vmatpush1.bf16.msra.mxu0 %v776
    %912 = vmatprep.subr.bf16.mxu0 %v770
    %913 = vmatpush1.bf16.msra.mxu0 %v769
    %914 = vmatprep.subr.bf16.mxu0 %v763
    %915 = vmatpush1.bf16.msra.mxu0 %v762
    %916 = vmatprep.subr.bf16.mxu0 0
    %917 = vmatpush2.bf16.msra.mxu0 0
    %918 = vmatprep.subr.bf16.mxu0 0
    %919 = vmatpush2.bf16.msra.mxu0 0
    %920 = vmatprep.subr.bf16.mxu0 0
    %921 = vmatpush2.bf16.msra.mxu0 0
    %922 = vmatprep.subr.bf16.mxu0 0
    %923 = vmatpush2.bf16.msra.mxu0 0
    %924 = vmatprep.subr.bf16.mxu0 0
    %925 = vmatpush2.bf16.msra.mxu0 0
    %926 = vmatprep.subr.bf16.mxu0 0
    %927 = vmatpush2.bf16.msra.mxu0 0
    %928 = vmatprep.subr.bf16.mxu0 0
    %929 = vmatpush2.bf16.msra.mxu0 0
    %930 = vmatprep.subr.bf16.mxu0 0
    %931 = vmatpush2.bf16.msra.mxu0 0
    %932 = vmatprep.mubr.bf16.mxu0 0
    %933 = vmatmul.mubr.bf16.gmra.mxu0 %v816
    %v934 = vpop.f32.mrf.mxu0
    %v935 = vadd.f32 %v654, %v934
    %v936 = vpop.f32.mrf.mxu0
    %v937 = vadd.f32 %v658, %v936
    %v938 = vpop.f32.mrf.mxu0
    %v939 = vpop.f32.mrf.mxu0
    %940 = vdwg.mxu0
    %941 = vmatprep.subr.bf16.mxu0 0
    %942 = vmatpush1.bf16.msra.mxu0 0
    %943 = vmatprep.subr.bf16.mxu0 0
    %944 = vmatpush1.bf16.msra.mxu0 0
    %945 = vmatprep.subr.bf16.mxu0 0
    %946 = vmatpush1.bf16.msra.mxu0 0
    %947 = vmatprep.subr.bf16.mxu0 0
    %948 = vmatpush1.bf16.msra.mxu0 0
    %949 = vmatprep.subr.bf16.mxu0 0
    %950 = vmatpush1.bf16.msra.mxu0 %v785
    %951 = vmatprep.subr.bf16.mxu0 0
    %952 = vmatpush1.bf16.msra.mxu0 %v778
    %953 = vmatprep.subr.bf16.mxu0 0
    %954 = vmatpush1.bf16.msra.mxu0 %v771
    %955 = vmatprep.subr.bf16.mxu0 0
    %956 = vmatpush1.bf16.msra.mxu0 %v764
    %957 = vmatprep.subr.bf16.mxu0 0
    %958 = vmatpush2.bf16.msra.mxu0 0
    %959 = vmatprep.subr.bf16.mxu0 0
    %960 = vmatpush2.bf16.msra.mxu0 0
    %961 = vmatprep.subr.bf16.mxu0 0
    %962 = vmatpush2.bf16.msra.mxu0 0
    %963 = vmatprep.subr.bf16.mxu0 0
    %964 = vmatpush2.bf16.msra.mxu0 0
    %965 = vmatprep.subr.bf16.mxu0 0
    %966 = vmatpush2.bf16.msra.mxu0 0
    %967 = vmatprep.subr.bf16.mxu0 0
    %968 = vmatpush2.bf16.msra.mxu0 0
    %969 = vmatprep.subr.bf16.mxu0 0
    %970 = vmatpush2.bf16.msra.mxu0 0
    %971 = vmatprep.subr.bf16.mxu0 0
    %972 = vmatpush2.bf16.msra.mxu0 0
    %973 = vmatprep.mubr.bf16.mxu0 0
    %974 = vmatmul.mubr.bf16.gmra.mxu0 %v816
    %v975 = vpop.f32.mrf.mxu0
    %v976 = vadd.f32 %v662, %v975
    %v977 = vpop.f32.mrf.mxu0
    %v978 = vpop.f32.mrf.mxu0
    %v979 = vpop.f32.mrf.mxu0
    %980 = vdwg.mxu0
    %v981 = vmul.f32 %v853, 0.5
    %v982 = vmul.f32 %v855, 0.5
    %v983 = vmul.f32 %v894, 0.5
    %v984 = vmul.f32 %v896, 0.5
    %v985 = vmul.f32 %v935, 0.5
    %v986 = vmul.f32 %v937, 0.5
    %v987 = vmul.f32 %v976, 0.5
    %v988 = vtanh.pop %v981
    %v989 = vtanh.pop %v982
    %v990 = vtanh.pop %v983
    %v991 = vtanh.pop %v984
    %v992 = vtanh.pop %v985
    %v993 = vtanh.pop %v986
    %v994 = vtanh.pop %v987
    %v995 = vmul.f32 %v988, 0.5
    %v996 = vmul.f32 %v989, 0.5
    %v997 = vmul.f32 %v990, 0.5
    %v998 = vmul.f32 %v991, 0.5
    %v999 = vmul.f32 %v992, 0.5
    %v1000 = vmul.f32 %v993, 0.5
    %v1001 = vmul.f32 %v994, 0.5
    %v1002 = vadd.f32 %v995, 0.5
    %v1003 = vadd.f32 %v996, 0.5
    %v1004 = vadd.f32 %v997, 0.5
    %v1005 = vadd.f32 %v998, 0.5
    %v1006 = vadd.f32 %v999, 0.5
    %v1007 = vadd.f32 %v1000, 0.5
    %v1008 = vadd.f32 %v1001, 0.5
    %1009 = vst [vmem:[#allocation2] sm:$0xff] %v1002
    %1010 = vst [vmem:[#allocation2 + $0x8] sm:$0xff] %v1003
    %1011 = vst [vmem:[#allocation2 + $0x10] sm:$0xff] %v1004
    %1012 = vst [vmem:[#allocation2 + $0x18] sm:$0xff] %v1005
    %1013 = vst [vmem:[#allocation2 + $0x20] sm:$0xff] %v1006
    %1014 = vst [vmem:[#allocation2 + $0x28] sm:$0xff] %v1007
    %1015 = vst.msk [vmem:[#allocation2 + $0x30] sm:$0xff] %vm435, %v1008
    // Predicated region
    $region22: #{autoencoder_forward.1} parent=1 // pred_check
      _
    $region23: #{autoencoder_forward.1} parent=1 // pred_check_branch
      %1017 = sbr.rel (0) target = $region25
    $region24: #{autoencoder_forward.1} parent=1 // pred_region
      %s1019 = ssub.s32 896, 896
      %1020 = vsyncadd [#allocation3], %s1019
      %s1022 = sshll.u32 [#allocation2], 4
      %s1023 = int_to_ptr.vmem [resolvable:$true] %s1022
      %1025 = dma.vmem_to_hbm [thread:$0]  %s1023, 896, %s5, [#allocation3]
    $region25: #{autoencoder_forward.1} parent=1 // pred_fallthru
      _
    // Predicated region
    $region26: #{autoencoder_forward.1} parent=1 // pred_check
      _
    $region27: #{autoencoder_forward.1} parent=1 // pred_check_branch
      %1027 = sbr.rel (0) target = $region29
    $region28: #{autoencoder_forward.1} parent=1 // pred_region
      %1028 = dma.done [#allocation3], 896
    $region29: #{autoencoder_forward.1} parent=1 // pred_fallthru
      _
    %1029 = vsyncpa [#allocation3], 1

</llo_original>
